<compile_context>
chip_gen: v5e
topology: v5e:2x2
jax: 0.10.0
libtpu: 0.0.40
codegen_flags: <defaults>
</compile_context>

<pallas_src>
import jax
import jax.numpy as jnp
from jax.experimental import pallas as pl
from jax.experimental.pallas import tpu as pltpu


def _softplus(x):
    # Numerically stable softplus using only exp/log/abs/max (safe lowering).
    return jnp.maximum(x, 0.0) + jnp.log(1.0 + jnp.exp(-jnp.abs(x)))


def _bayes_conv1x1_kernel(x_ref, p_ref, o_ref):
    """x_ref: (N, hw_tile), p_ref: (NC, 6+N), o_ref: (NC, hw_tile).

    p columns: [w_mu, w_rho, w_eps, b_mu, b_rho, b_eps, onehot(batch)...],
    one row per (batch, out_channel) pair, row r -> (n = r // C_out, o = r % C_out).
    """
    p = p_ref[...]
    # Reparameterized Bayesian sample, per output row (EUP softplus).
    w_full = p[:, 0:1] + _softplus(p[:, 1:2]) * p[:, 2:3]      # (NC, 1)
    b_full = p[:, 3:4] + _softplus(p[:, 4:5]) * p[:, 5:6]      # (NC, 1)
    # Block-diagonal weight matrix: P[r, n] = w_full[r] iff row r belongs to
    # batch n (columns 6: hold the precomputed one-hot batch mask).
    P = p[:, 6:] * w_full                                      # (NC, N)
    # One MXU dot produces the whole lane/sublane-dense output tile -> one
    # unmasked full-tile store.  Kernel is HBM-write-bound; the tiny K=N
    # contraction is free.
    o_ref[...] = (
        jnp.dot(P, x_ref[...], preferred_element_type=jnp.float32) + b_full
    ).astype(o_ref.dtype)


def _round_up(x, m):
    return ((x + m - 1) // m) * m


def _plan_hw_tiling(hw, n_batch, nc):
    """Pick (hw_padded, hw_tile) for the lane (HW) axis."""
    # Double-buffered pipeline footprint per lane:
    #   x block (N rows) + out block (NC rows), f32, 2 buffers each.
    bytes_per_lane = 2 * (n_batch + nc) * 4
    budget_lanes = (24 << 20) // bytes_per_lane        # ~24 MiB of pipeline bufs

    if hw <= 2048:
        # Tiny problem: one full tile; pallas_call fixed cost dominates anyway.
        return hw, hw

    for t in (65536, 32768, 16384, 8192, 4096, 2048, 1024, 512):
        padded = _round_up(hw, t)
        if (t <= budget_lanes
                and 2 * t <= _round_up(hw, 512)   # >=2 grid steps (v7x megacore)
                and padded <= hw + hw // 8):      # <=12.5% padding waste
            return padded, t
    return _round_up(hw, 512), 512


def dummy_model_conv_forward(x_nchw, w_mu, w_rho, w_eps, b_mu, b_rho, b_eps):
    """x_nchw: (N, 1, H, W) float32.  Returns (N, C_out, H, W) float32."""
    N, C_in, H, W = x_nchw.shape
    assert C_in == 1, "BayesConv2d(1, 10, 1) expects 1 input channel"
    C_out = w_mu.shape[0]
    HW = H * W
    NC = N * C_out

    # Glue reshape (free): C_in == 1 so (N,1,H,W) -> (N, HW).
    x2d = x_nchw.reshape(N, HW).astype(jnp.float32)

    # One tiny parameter array -> single DMA, constant index_map.
    p6 = jnp.stack(
        [w_mu.reshape(C_out), w_rho.reshape(C_out), w_eps.reshape(C_out),
         b_mu.reshape(C_out), b_rho.reshape(C_out), b_eps.reshape(C_out)],
        axis=-1).astype(jnp.float32)                             # (C_out, 6)
    p6_full = jnp.tile(p6, (N, 1))                               # (NC, 6)
    mask = jnp.repeat(jnp.eye(N, dtype=jnp.float32), C_out, axis=0)  # (NC, N)
    params = jnp.concatenate([p6_full, mask], axis=-1)           # (NC, 6+N)

    hw_pad, hw_tile = _plan_hw_tiling(HW, N, NC)
    if hw_pad != HW:
        x2d = jnp.pad(x2d, ((0, 0), (0, hw_pad - HW)))
    num_tiles = hw_pad // hw_tile

    # Explicit VMEM limit: covers big tiles on v5e (16 MiB scoped default)
    # while staying well inside v7x's 64 MiB physical VMEM.
    pipeline_bytes = 2 * (N + NC) * 4 * hw_tile
    vmem_limit = min(48 << 20, max(pipeline_bytes * 5 // 4 + (2 << 20), 32 << 20))

    # TODO(synk): for large batch N, put N on a second "parallel" grid axis
    # instead of growing P's (NC, N) contraction dimension.
    out2d = pl.pallas_call(
        _bayes_conv1x1_kernel,
        out_shape=jax.ShapeDtypeStruct((NC, hw_pad), jnp.float32),
        grid=(num_tiles,),
        in_specs=[
            # x: full batch rows (second-minor = full array dim N), lane-tiled.
            pl.BlockSpec((N, hw_tile), lambda j: (0, j)),
            # params: one tiny block, constant index -> fetched once.
            pl.BlockSpec((NC, 6 + N), lambda j: (0, 0)),
        ],
        # Lane-dense 2D output slab; same bytes as (N, C_out, HW) row-major.
        out_specs=pl.BlockSpec((NC, hw_tile), lambda j: (0, j)),
        compiler_params=pltpu.CompilerParams(
            dimension_semantics=("parallel",),
            vmem_limit_bytes=vmem_limit),
    )(x2d, params)

    if hw_pad != HW:
        out2d = out2d[:, :HW]
    # Free: (NC, HW) row-major is byte-identical to (N, C_out, H, W).
    return out2d.reshape(N, C_out, H, W)


if __name__ == "__main__":
    key = jax.random.PRNGKey(0)
    k_x, k_wmu, k_weps, k_bmu, k_beps = jax.random.split(key, 5)

    # Shapes implied by BayesConv2d(1, 10, 1): weight (10,1,1,1), bias (10,).
    N, C_in, H, W = 2, 1, 16, 16
    C_out = 10

    x = jax.random.normal(k_x, (N, C_in, H, W), dtype=jnp.float32)

    # Deterministic synthetic parameters (no checkpoint load).
    w_mu = 0.1 * jax.random.normal(k_wmu, (C_out, 1, 1, 1), dtype=jnp.float32)
    w_rho = jnp.full((C_out, 1, 1, 1), -3.0, dtype=jnp.float32)
    w_eps = jax.random.normal(k_weps, (C_out, 1, 1, 1), dtype=jnp.float32)
    b_mu = 0.1 * jax.random.normal(k_bmu, (C_out,), dtype=jnp.float32)
    b_rho = jnp.full((C_out,), -3.0, dtype=jnp.float32)
    b_eps = jax.random.normal(k_beps, (C_out,), dtype=jnp.float32)

    out = dummy_model_conv_forward(x, w_mu, w_rho, w_eps, b_mu, b_rho, b_eps)
    out = jax.block_until_ready(out)

    # Pure-JAX reference (F.conv2d with 1x1 kernel, C_in=1).
    w = (w_mu + jax.nn.softplus(w_rho) * w_eps).reshape(C_out)
    b = (b_mu + jax.nn.softplus(b_rho) * b_eps).reshape(C_out)
    ref = (x[:, 0, :, :][:, None, :, :] * w[None, :, None, None]
           + b[None, :, None, None])

    assert out.shape == (N, C_out, H, W)
    assert jnp.allclose(out, ref, atol=1e-5, rtol=1e-5)
    print("KERNEL_OK")
</pallas_src>

<mosaic_0001>
module attributes {stable_mosaic.version = 11 : i64} {
  func.func @_bayes_conv1x1_kernel(%arg0: i32, %arg1: memref<2x256xf32, #tpu.memory_space<vmem>>, %arg2: memref<20x8xf32, #tpu.memory_space<vmem>>, %arg3: memref<20x256xf32, #tpu.memory_space<vmem>>) attributes {dimension_semantics = [#tpu.dimension_semantics<parallel>], iteration_bounds = array<i64: 1>, scalar_prefetch = 0 : i64, scratch_operands = 0 : i64, tpu.core_type = #tpu.core_type<tc>, window_params = [{transform_indices = @transform_0, window_bounds = array<i64: 2, 256>}, {pipeline_mode = #tpu.pipeline_mode<synchronous>, transform_indices = @transform_1, window_bounds = array<i64: 20, 8>}, {transform_indices = @transform_2, window_bounds = array<i64: 20, 256>}]} {
    %c0 = arith.constant 0 : index
    %c0_0 = arith.constant 0 : index
    %0 = vector.load %arg2[%c0, %c0_0] : memref<20x8xf32, #tpu.memory_space<vmem>>, vector<20x8xf32>
    %1 = vector.extract_strided_slice %0 {offsets = [0, 0], sizes = [20, 1], strides = [1, 1]} : vector<20x8xf32> to vector<20x1xf32>
    %2 = vector.extract_strided_slice %0 {offsets = [0, 1], sizes = [20, 1], strides = [1, 1]} : vector<20x8xf32> to vector<20x1xf32>
    %cst = arith.constant 0.000000e+00 : f32
    %3 = vector.broadcast %cst : f32 to vector<20x1xf32>
    %4 = arith.maximumf %2, %3 : vector<20x1xf32>
    %5 = math.absf %2 : vector<20x1xf32>
    %cst_1 = arith.constant 0.000000e+00 : f32
    %6 = vector.broadcast %cst_1 : f32 to vector<20x1xf32>
    %7 = arith.subf %6, %5 : vector<20x1xf32>
    %8 = math.exp %7 : vector<20x1xf32>
    %cst_2 = arith.constant 1.000000e+00 : f32
    %9 = vector.broadcast %cst_2 : f32 to vector<20x1xf32>
    %10 = arith.addf %9, %8 : vector<20x1xf32>
    %11 = math.log %10 : vector<20x1xf32>
    %12 = arith.addf %4, %11 : vector<20x1xf32>
    %13 = vector.extract_strided_slice %0 {offsets = [0, 2], sizes = [20, 1], strides = [1, 1]} : vector<20x8xf32> to vector<20x1xf32>
    %14 = arith.mulf %12, %13 : vector<20x1xf32>
    %15 = arith.addf %1, %14 : vector<20x1xf32>
    %16 = vector.extract_strided_slice %0 {offsets = [0, 3], sizes = [20, 1], strides = [1, 1]} : vector<20x8xf32> to vector<20x1xf32>
    %17 = vector.extract_strided_slice %0 {offsets = [0, 4], sizes = [20, 1], strides = [1, 1]} : vector<20x8xf32> to vector<20x1xf32>
    %cst_3 = arith.constant 0.000000e+00 : f32
    %18 = vector.broadcast %cst_3 : f32 to vector<20x1xf32>
    %19 = arith.maximumf %17, %18 : vector<20x1xf32>
    %20 = math.absf %17 : vector<20x1xf32>
    %cst_4 = arith.constant 0.000000e+00 : f32
    %21 = vector.broadcast %cst_4 : f32 to vector<20x1xf32>
    %22 = arith.subf %21, %20 : vector<20x1xf32>
    %23 = math.exp %22 : vector<20x1xf32>
    %cst_5 = arith.constant 1.000000e+00 : f32
    %24 = vector.broadcast %cst_5 : f32 to vector<20x1xf32>
    %25 = arith.addf %24, %23 : vector<20x1xf32>
    %26 = math.log %25 : vector<20x1xf32>
    %27 = arith.addf %19, %26 : vector<20x1xf32>
    %28 = vector.extract_strided_slice %0 {offsets = [0, 5], sizes = [20, 1], strides = [1, 1]} : vector<20x8xf32> to vector<20x1xf32>
    %29 = arith.mulf %27, %28 : vector<20x1xf32>
    %30 = arith.addf %16, %29 : vector<20x1xf32>
    %31 = vector.extract_strided_slice %0 {offsets = [0, 6], sizes = [20, 2], strides = [1, 1]} : vector<20x8xf32> to vector<20x2xf32>
    %32 = vector.broadcast %15 : vector<20x1xf32> to vector<20x2xf32>
    %33 = arith.mulf %31, %32 : vector<20x2xf32>
    %c0_6 = arith.constant 0 : index
    %c0_7 = arith.constant 0 : index
    %34 = vector.load %arg1[%c0_6, %c0_7] : memref<2x256xf32, #tpu.memory_space<vmem>>, vector<2x256xf32>
    %cst_8 = arith.constant dense<0.000000e+00> : vector<20x256xf32>
    %35 = tpu.matmul %33, %34, %cst_8 {dimension_numbers = #tpu.dot_dimension_numbers<[1], [0], [0], [1], [0, 0, 1, 1], [], []>} : vector<20x2xf32>, vector<2x256xf32>, vector<20x256xf32> -> vector<20x256xf32>
    %36 = vector.broadcast %30 : vector<20x1xf32> to vector<20x256xf32>
    %37 = arith.addf %35, %36 : vector<20x256xf32>
    %c0_9 = arith.constant 0 : index
    %c0_10 = arith.constant 0 : index
    %38 = vector.load %arg3[%c0_9, %c0_10] : memref<20x256xf32, #tpu.memory_space<vmem>>, vector<20x256xf32>
    tpu.vector_store %arg3[%c0_9, %c0_10], %37 {strides = array<i32>} : memref<20x256xf32, #tpu.memory_space<vmem>>, vector<20x256xf32>,
    return
  }
  func.func @transform_0(%arg0: i32) -> (i32, i32) {
    %c0_i32 = arith.constant 0 : i32
    %c0_i32_0 = arith.constant 0 : i32
    return %c0_i32, %arg0 : i32, i32
  }
  func.func @transform_1(%arg0: i32) -> (i32, i32) {
    %c0_i32 = arith.constant 0 : i32
    %c0_i32_0 = arith.constant 0 : i32
    %c0_i32_1 = arith.constant 0 : i32
    return %c0_i32, %c0_i32_0 : i32, i32
  }
  func.func @transform_2(%arg0: i32) -> (i32, i32) {
    %c0_i32 = arith.constant 0 : i32
    %c0_i32_0 = arith.constant 0 : i32
    return %c0_i32, %arg0 : i32, i32
  }
}

</mosaic_0001>

<llo_original>
// kernel: tpu_custom_call.1
$region0: #{tpu_custom_call.1}
  #allocation0 [shape = 'u32[]', space=smem, size = 0x4, offset = 0x4, fixed_abs, tag = 'smem constant byte address 0x4 - core index']
  #allocation1 [shape = 'u32[72,128]{1,0:T(1,128)}', space=vmem, size = 0x9000, scoped, tag = 'internal scratch']
  %s0 = inlined_call_operand.vmem [shape: f32[2,256], index: 0, kind: input, shape index: {}]
  %s1 = inlined_call_operand.vmem [shape: f32[20,8], index: 1, kind: input, shape index: {}]
  %s2 = inlined_call_operand.hbm [shape: f32[20,256], index: 2, kind: output, shape index: {}]
  %s3 = sld [smem:[#allocation0]]
  $region18: #{tpu_custom_call.1} parent=0
    _
  %s5 = ssub.s32 1, %s3
  %s6 = scalar_select 0, %s5, %s3
  $region1: #{tpu_custom_call.1} parent=0
    #allocation2 [shape = 'u8[24576]{0}', space=vmem, size = 0x6000, scoped, tag = 'output window, operand 0, single buffered']
    #allocation3 [shape = 's32[1]{0}', space=sflag, size = 0x4, scoped, tag = 'scoped memory for tpu_custom_call.1']
    %7 = vsyncpa [#allocation3], 0
    // Predicated region
    $region2: #{tpu_custom_call.1} parent=1 // pred_check
      _
    $region3: #{tpu_custom_call.1} parent=1 // pred_check_branch
      %9 = sbr.rel (0) target = $region5
    $region4: #{tpu_custom_call.1} parent=1 // pred_region
      _
    $region5: #{tpu_custom_call.1} parent=1 // pred_fallthru
      _
    // Predicated region
    $region6: #{tpu_custom_call.1} parent=1 // pred_check
      _
    $region7: #{tpu_custom_call.1} parent=1 // pred_check_branch
      %11 = sbr.rel (0) target = $region9
    $region8: #{tpu_custom_call.1} parent=1 // pred_region
      _
    $region9: #{tpu_custom_call.1} parent=1 // pred_fallthru
      _
    %v12 = vld [vmem:[%s1] sm:$0xff]
    %v13 = vld [vmem:[%s1 + $0x8] sm:$0xff]
    %v14 = vld [vmem:[%s1 + $0x10] sm:$0xf]
    %v15 = vmax.f32 %v12, 0.0
    %v16 = vmax.f32 %v13, 0.0
    %v17 = vmax.f32 %v14, 0.0
    %v18 = vand.u32 2147483647, %v12
    %v19 = vand.u32 2147483647, %v13
    %v20 = vand.u32 2147483647, %v14
    %v21 = vsub.f32 0.0, %v18
    %v22 = vsub.f32 0.0, %v19
    %v23 = vsub.f32 0.0, %v20
    %v24 = vmul.f32 %v21, 1.442695
    %v25 = vpow.pop %v24
    %v26 = vmul.f32 %v22, 1.442695
    %v27 = vpow.pop %v26
    %v28 = vmul.f32 %v23, 1.442695
    %v29 = vpow.pop %v28
    %v30 = vadd.f32 %v25, 1.0
    %v31 = vadd.f32 %v27, 1.0
    %v32 = vadd.f32 %v29, 1.0
    %v33 = vlog2.pop %v30
    %v34 = vmul.f32 %v33, 0.6931472
    %v35 = vlog2.pop %v31
    %v36 = vmul.f32 %v35, 0.6931472
    %v37 = vlog2.pop %v32
    %v38 = vmul.f32 %v37, 0.6931472
    %v39 = vadd.f32 %v15, %v34
    %v40 = vadd.f32 %v16, %v36
    %v41 = vadd.f32 %v17, %v38
    %45 = vrot.lane.b32.xlu0 %v12, 127
    %v46 = vpop.permute.xlu0 %45
    %47 = vrot.lane.b32.xlu0 %v13, 127
    %v48 = vpop.permute.xlu0 %47
    %49 = vrot.lane.b32.xlu0 %v14, 127
    %v50 = vpop.permute.xlu0 %49
    %v54 = vmul.f32 %v39, %v46
    %v55 = vmul.f32 %v40, %v48
    %v56 = vmul.f32 %v41, %v50
    %60 = vrot.lane.b32.xlu0 %v54, 127
    %v61 = vpop.permute.xlu0 %60
    %62 = vrot.lane.b32.xlu0 %v55, 127
    %v63 = vpop.permute.xlu0 %62
    %64 = vrot.lane.b32.xlu0 %v56, 127
    %v65 = vpop.permute.xlu0 %64
    %v69 = vadd.f32 %v12, %v61
    %v70 = vadd.f32 %v13, %v63
    %v71 = vadd.f32 %v14, %v65
    %73 = vset.pattern.permute.xlu0 0
    %74 = vperm.xlu0 %73, %v69
    %v75 = vpop.permute.xlu0 %74
    %78 = vset.pattern.permute.xlu0 0
    %79 = vperm.xlu0 %78, %v70
    %v80 = vpop.permute.xlu0 %79
    %83 = vset.pattern.permute.xlu0 0
    %84 = vperm.xlu0 %83, %v71
    %v85 = vpop.permute.xlu0 %84
    %v87 = vmul.f32 %v12, %v75
    %v88 = vmul.f32 %v13, %v80
    %v89 = vmul.f32 %v14, %v85
    %v90 = vld [vmem:[%s0] sm:$0xf]
    %91 = vset.pattern.permute.xlu0 3
    %92 = vperm.xlu0 %91, %v69
    %v93 = vpop.permute.xlu0 %92
    %95 = vset.pattern.permute.xlu0 3
    %96 = vperm.xlu0 %95, %v70
    %v97 = vpop.permute.xlu0 %96
    %99 = vset.pattern.permute.xlu0 3
    %100 = vperm.xlu0 %99, %v71
    %v101 = vpop.permute.xlu0 %100
    %106 = vrot.lane.b32.xlu0 %v87, 122
    %v107 = vpop.permute.xlu0 %106
    %108 = vrot.lane.b32.xlu0 %v88, 122
    %v109 = vpop.permute.xlu0 %108
    %110 = vrot.lane.b32.xlu0 %v89, 122
    %v111 = vpop.permute.xlu0 %110
    %113 = vst [vmem:[#allocation1] ss:$4 sm:$0xff] %v90
    %v114 = vld.sshfl [vmem:[#allocation1] sm:$0xff pattern:$0x73625140]
    %v115 = vld.sshfl [vmem:[#allocation1 + $0x8] sm:$0xff pattern:$0x73625140]
    %vm116 = vcmask 15360
    %v117 = vsel %vm116, %v107, 0
    %v119 = vsel %vm116, %v109, 0
    %v121 = vsel %vm116, %v111, 0
    %vm123 = vcmask 1041408
    %v124 = vsel %vm123, %v114, 0
    %v126 = vsel %vm123, %v115, 0
    %128 = vmatpush.msra.mxu0 0.0
    %129 = vmatpush.msra.mxu0 0.0
    %130 = vmatpush.msra.mxu0 0.0
    %131 = vmatpush.msra.mxu0 0.0
    %132 = vmatpush.msra.mxu0 0.0
    %133 = vmatpush.msra.mxu0 0.0
    %134 = vmatpush.msra.mxu0 0.0
    %135 = vmatpush.msra.mxu0 0.0
    %136 = vmatpush.msra.mxu0 0.0
    %137 = vmatpush.msra.mxu0 0.0
    %138 = vmatpush.msra.mxu0 0.0
    %139 = vmatpush.msra.mxu0 0.0
    %140 = vmatpush.msra.mxu0 0.0
    %141 = vmatpush.msra.mxu0 0.0
    %142 = vmatpush.msra.mxu0 0.0
    %143 = vmatpush.msra.mxu0 %v124
    %144 = vmatmul.f32.gmra.mxu0 %v117
    %v145 = vpop.f32.mrf.mxu0
    %v146 = vadd.f32 %v93, %v145
    %147 = vmatmul.f32.gmra.mxu0 %v119
    %v148 = vpop.f32.mrf.mxu0
    %v149 = vadd.f32 %v97, %v148
    %150 = vmatmul.f32.gmra.mxu0 %v121
    %v151 = vpop.f32.mrf.mxu0
    %v152 = vadd.f32 %v101, %v151
    %153 = vdwg.mxu0
    %154 = vmatpush.msra.mxu0 0.0
    %155 = vmatpush.msra.mxu0 0.0
    %156 = vmatpush.msra.mxu0 0.0
    %157 = vmatpush.msra.mxu0 0.0
    %158 = vmatpush.msra.mxu0 0.0
    %159 = vmatpush.msra.mxu0 0.0
    %160 = vmatpush.msra.mxu0 0.0
    %161 = vmatpush.msra.mxu0 0.0
    %162 = vmatpush.msra.mxu0 0.0
    %163 = vmatpush.msra.mxu0 0.0
    %164 = vmatpush.msra.mxu0 0.0
    %165 = vmatpush.msra.mxu0 0.0
    %166 = vmatpush.msra.mxu0 0.0
    %167 = vmatpush.msra.mxu0 0.0
    %168 = vmatpush.msra.mxu0 0.0
    %169 = vmatpush.msra.mxu0 %v126
    %170 = vmatmul.f32.gmra.mxu0 %v117
    %v171 = vpop.f32.mrf.mxu0
    %v172 = vadd.f32 %v93, %v171
    %173 = vmatmul.f32.gmra.mxu0 %v119
    %v174 = vpop.f32.mrf.mxu0
    %v175 = vadd.f32 %v97, %v174
    %176 = vmatmul.f32.gmra.mxu0 %v121
    %v177 = vpop.f32.mrf.mxu0
    %v178 = vadd.f32 %v101, %v177
    %179 = vdwg.mxu0
    %180 = vst [vmem:[#allocation2] sm:$0xff] %v146
    %181 = vst [vmem:[#allocation2 + $0x8] sm:$0xff] %v172
    %182 = vst [vmem:[#allocation2 + $0x10] sm:$0xff] %v149
    %183 = vst [vmem:[#allocation2 + $0x18] sm:$0xff] %v175
    %184 = vst [vmem:[#allocation2 + $0x20] sm:$0xf] %v152
    %185 = vst [vmem:[#allocation2 + $0x28] sm:$0xf] %v178
    // Predicated region
    $region10: #{tpu_custom_call.1} parent=1 // pred_check
      _
    $region11: #{tpu_custom_call.1} parent=1 // pred_check_branch
      %187 = sbr.rel (0) target = $region13
    $region12: #{tpu_custom_call.1} parent=1 // pred_region
      %189 = vsyncadd [#allocation3], 0
      %s190 = sshll.u32 [#allocation2], 4
      %s191 = int_to_ptr.vmem [resolvable:$true] %s190
      %s192 = sshll.u32 %s2, 4
      %s193 = int_to_ptr.hbm [resolvable:$true] %s192
      %198 = dma.vmem_to_hbm [thread:$0]  %s191, 768, %s193, [#allocation3], 256, 256, 16
    $region13: #{tpu_custom_call.1} parent=1 // pred_fallthru
      _
    // Predicated region
    $region14: #{tpu_custom_call.1} parent=1 // pred_check
      _
    $region15: #{tpu_custom_call.1} parent=1 // pred_check_branch
      %200 = sbr.rel (0) target = $region17
    $region16: #{tpu_custom_call.1} parent=1 // pred_region
      %202 = dma.done [#allocation3], 768
    $region17: #{tpu_custom_call.1} parent=1 // pred_fallthru
      _
    %203 = vsyncpa [#allocation3], 1

</llo_original>
